<compile_context>
chip_gen: v6e
topology: v6e:2x2x1
jax: 0.10.0
libtpu: 0.0.40
codegen_flags: <defaults>
</compile_context>

<pallas_src>
import functools

import numpy as np
import jax
import jax.numpy as jnp
from jax.experimental import pallas as pl
from jax.experimental.pallas import tpu as pltpu


def _round_up(x, m):
    return ((x + m - 1) // m) * m


# ---------------------------------------------------------------------------
# Pallas kernel: per-triplet hinge losses over pre-gathered triplets.
# Grid = (T-blocks ["parallel"], D-chunks ["arbitrary"]).
# ---------------------------------------------------------------------------
def _margin_loss_kernel(a_ref, p_ref, n_ref, beta_ref, mask_ref,
                        pos_ref, neg_ref, ap_acc, an_acc, *, margin):
    """
    a/p/n_ref : (TT, TD)  bf16 anchor / positive / negative chunk      (VMEM)
    beta_ref  : (TT, 128) f32 per-triplet class margin, lane-broadcast (VMEM)
    mask_ref  : (TT, 128) f32 1.0 real row / 0.0 padded row            (VMEM)
    pos_ref   : (TT, 1)   f32 per-triplet positive hinge (output)      (VMEM)
    neg_ref   : (TT, 1)   f32 per-triplet negative hinge (output)      (VMEM)
    ap/an_acc : (TT, 128) f32 lane-dense squared-distance partial sums (scratch)
    """
    k = pl.program_id(1)

    @pl.when(k == 0)
    def _init():
        ap_acc[...] = jnp.zeros_like(ap_acc)
        an_acc[...] = jnp.zeros_like(an_acc)

    # Lane-dense accumulation: pure VPU adds over lane-aligned 128-wide
    # sub-chunks. No per-step cross-lane reduce and no narrow stores in the
    # hot loop; everything hides under the input DMAs.
    ap = ap_acc[...]
    an = an_acc[...]
    n_sub = a_ref.shape[1] // 128          # TD is always a multiple of 128
    for c in range(n_sub):
        sl = slice(c * 128, (c + 1) * 128)
        a = a_ref[:, sl].astype(jnp.float32)
        p = p_ref[:, sl].astype(jnp.float32)
        n = n_ref[:, sl].astype(jnp.float32)
        dap = a - p
        dan = a - n
        ap = ap + dap * dap
        an = an + dan * dan
    ap_acc[...] = ap
    an_acc[...] = an

    @pl.when(k == pl.num_programs(1) - 1)
    def _epilogue():
        beta = beta_ref[:, 0:1]
        mask = mask_ref[:, 0:1]
        # Single cross-lane reduce per T-block (XLU), then sqrt / hinges.
        d_ap = jnp.sqrt(jnp.sum(ap_acc[...], axis=1, keepdims=True) + 1e-8)
        d_an = jnp.sqrt(jnp.sum(an_acc[...], axis=1, keepdims=True) + 1e-8)
        pos_ref[...] = mask * jnp.maximum(d_ap - beta + margin, 0.0)
        neg_ref[...] = mask * jnp.maximum(beta - d_an + margin, 0.0)


# ---------------------------------------------------------------------------
# Tile selection: VMEM-budgeted, lane-aligned, no 128-wide fallback.
# ---------------------------------------------------------------------------
def _choose_tiles(t, d, itemsize):
    # Rows: multiples of 16 (bf16 sublane packing).
    t_pad = _round_up(max(t, 1), 16)
    # T-blocks: split once there is enough work so both v7x TensorCores get a
    # block ("parallel" axis); cap blocks at 256 rows so per-step input blocks
    # stay a few MiB.
    if t_pad >= 32:
        n_t = max(2, -(-t_pad // 256))
    else:
        n_t = 1
    tt = _round_up(-(-t_pad // n_t), 16)
    t_pad = tt * n_t

    # D-chunk cap: keep 3 operands x 2 buffers comfortably inside the smallest
    # VMEM generation (v7x: 64 MiB physical / TC).
    budget = 16 << 20
    cap = max(128, min(2048, (budget // (3 * 2 * tt * itemsize)) // 128 * 128))

    d_pad = _round_up(max(d, 1), 128)
    td = 128
    for m in range(cap // 128, 0, -1):      # largest 128-multiple divisor <= cap
        if d_pad % (m * 128) == 0:
            td = m * 128
            break
    if td < min(cap, 512) and td != d_pad:
        # Only tiny divisors exist: pad D up to a multiple of the cap-sized
        # tile instead (zero columns contribute nothing to the squared sums).
        td = cap
        d_pad = _round_up(d_pad, td)
    return t_pad, tt, d_pad, td


def margin_loss_pallas(anchors, positives, negatives, betas, mask, *,
                       margin, tt, td):
    """anchors/positives/negatives: (T_pad, D_pad); betas/mask: (T_pad, 128)."""
    t_pad, d_pad = anchors.shape
    grid = (t_pad // tt, d_pad // td)
    itemsize = anchors.dtype.itemsize

    # VMEM sized from actual need (double-buffered inputs + aux + outputs +
    # accumulators) plus headroom; always well under v7x's 64 MiB.
    vmem_bytes = (3 * 2 * tt * td * itemsize    # A/P/N, double-buffered
                  + 2 * 2 * tt * 128 * 4        # beta/mask, double-buffered
                  + 2 * 2 * tt * 4              # outputs, double-buffered
                  + 2 * tt * 128 * 4)           # f32 accumulators
    vmem_limit = int(min(max(vmem_bytes + (8 << 20), 16 << 20), 56 << 20))

    kernel = functools.partial(_margin_loss_kernel, margin=float(margin))
    pos, neg = pl.pallas_call(
        kernel,
        out_shape=(jax.ShapeDtypeStruct((t_pad, 1), jnp.float32),
                   jax.ShapeDtypeStruct((t_pad, 1), jnp.float32)),
        grid_spec=pltpu.PrefetchScalarGridSpec(
            num_scalar_prefetch=0,
            grid=grid,
            in_specs=[
                pl.BlockSpec((tt, td), lambda t, k: (t, k)),
                pl.BlockSpec((tt, td), lambda t, k: (t, k)),
                pl.BlockSpec((tt, td), lambda t, k: (t, k)),
                pl.BlockSpec((tt, 128), lambda t, k: (t, 0)),
                pl.BlockSpec((tt, 128), lambda t, k: (t, 0)),
            ],
            out_specs=(pl.BlockSpec((tt, 1), lambda t, k: (t, 0)),
                       pl.BlockSpec((tt, 1), lambda t, k: (t, 0))),
            scratch_shapes=[pltpu.VMEM((tt, 128), jnp.float32),
                            pltpu.VMEM((tt, 128), jnp.float32)],
        ),
        compiler_params=pltpu.CompilerParams(
            dimension_semantics=("parallel", "arbitrary"),
            vmem_limit_bytes=vmem_limit,
        ),
    )(anchors, positives, negatives, betas, mask)
    return pos, neg


# ---------------------------------------------------------------------------
# Host-side glue: distance-weighted triplet sampling (TupleSampler 'distance').
# ---------------------------------------------------------------------------
def _pdist_np(A):
    prod = A @ A.T
    norm = np.diag(prod)[:, None]
    res = np.clip(norm + norm.T - 2.0 * prod, 0.0, None)
    return np.sqrt(res)


def _inverse_sphere_distances(dim, dist, labels, anchor_label):
    dist = dist.astype(np.float64)
    with np.errstate(divide="ignore", invalid="ignore"):
        log_q_d_inv = ((2.0 - float(dim)) * np.log(dist)
                       - (float(dim - 3) / 2.0) * np.log(1.0 - 0.25 * dist ** 2))
    log_q_d_inv[labels == anchor_label] = 0.0
    q_d_inv = np.exp(log_q_d_inv - np.max(log_q_d_inv))
    q_d_inv[labels == anchor_label] = 0.0
    q_d_inv = q_d_inv / q_d_inv.sum()
    return q_d_inv


def distance_weighted_sampling(batch, labels, rng, lower_cutoff=0.5):
    """Deterministic (seeded) replica of TupleSampler.distanceweightedsampling."""
    batch = np.asarray(batch, dtype=np.float64)
    labels = np.asarray(labels)
    bs, dim = batch.shape
    distances = np.clip(_pdist_np(batch), lower_cutoff, None)
    anchors, positives, negatives = [], [], []
    for i in range(bs):
        pos = labels == labels[i]
        q_d_inv = _inverse_sphere_distances(dim, distances[i], labels, labels[i])
        pos[i] = False
        anchors.append(i)
        positives.append(int(rng.choice(np.where(pos)[0])))
        negatives.append(int(rng.choice(bs, p=q_d_inv)))
    return [[a, p, n] for a, p, n in zip(anchors, positives, negatives)]


# ---------------------------------------------------------------------------
# MarginLoss.forward: sampling (host glue) + gather + Pallas kernel + reduce.
# ---------------------------------------------------------------------------
def margin_loss_forward(batch, labels, triplets, beta_params, margin=0.2,
                        compute_dtype=jnp.bfloat16):
    trip = np.asarray(triplets, dtype=np.int32)       # (T, 3)
    labels = np.asarray(labels)
    T = trip.shape[0]
    D = batch.shape[1]

    t_pad, tt, d_pad, td = _choose_tiles(T, D, jnp.dtype(compute_dtype).itemsize)

    # Operands travel through HBM as bf16; kernel accumulates in f32.
    # TODO(synk): for very large T, fuse this row gather into the kernel with a
    # manual-DMA gather (batch in pl.ANY + scalar-prefetched index arrays) to
    # remove one HBM round trip of the gathered operands; at MarginLoss batch
    # sizes the gathered tensors are tiny so the XLA device gather is kept.
    batch_c = jnp.asarray(batch).astype(compute_dtype)
    A = jnp.take(batch_c, jnp.asarray(trip[:, 0]), axis=0)
    P = jnp.take(batch_c, jnp.asarray(trip[:, 1]), axis=0)
    N = jnp.take(batch_c, jnp.asarray(trip[:, 2]), axis=0)

    def pad2d(x):
        return jnp.pad(x, ((0, t_pad - x.shape[0]), (0, d_pad - x.shape[1])))

    A, P, N = pad2d(A), pad2d(P), pad2d(N)

    # Lane-dense beta / validity mask (contiguous DMAs, fetched once per block).
    betas_np = np.zeros((t_pad, 128), np.float32)
    betas_np[:T, :] = np.asarray(beta_params, np.float32)[labels[trip[:, 0]]][:, None]
    mask_np = np.zeros((t_pad, 128), np.float32)
    mask_np[:T, :] = 1.0

    pos, neg = margin_loss_pallas(A, P, N, jnp.asarray(betas_np),
                                  jnp.asarray(mask_np), margin=margin,
                                  tt=tt, td=td)

    # Tiny final reduction in JAX (padded rows are exactly zero).
    pair_count = (jnp.sum((pos > 0.0).astype(jnp.float32))
                  + jnp.sum((neg > 0.0).astype(jnp.float32)))
    total = jnp.sum(pos + neg)
    # pair_count == 0 implies total == 0, so dividing by max(count, 1)
    # reproduces both branches of the torch code exactly.
    # TODO(synk): nu-weighted beta regularisation skipped (nu=0 default; the
    # reference code's `beta_regularisation_loss` is undefined anyway).
    return total / jnp.maximum(pair_count, 1.0)


# ---------------------------------------------------------------------------
# Pure numpy reference of MarginLoss.forward given the sampled triplets.
# ---------------------------------------------------------------------------
def _numpy_reference(batch, triplets, beta_params, labels, margin=0.2):
    batch = np.asarray(batch, dtype=np.float64)
    beta_params = np.asarray(beta_params, dtype=np.float64)
    labels = np.asarray(labels)
    d_ap, d_an, betas = [], [], []
    for a, p, n in triplets:
        d_ap.append(np.sqrt(np.sum((batch[a] - batch[p]) ** 2) + 1e-8))
        d_an.append(np.sqrt(np.sum((batch[a] - batch[n]) ** 2) + 1e-8))
        betas.append(beta_params[labels[a]])
    d_ap, d_an, betas = map(np.asarray, (d_ap, d_an, betas))
    pos_loss = np.maximum(d_ap - betas + margin, 0.0)
    neg_loss = np.maximum(betas - d_an + margin, 0.0)
    pair_count = float(np.sum(pos_loss > 0.0) + np.sum(neg_loss > 0.0))
    total = float(np.sum(pos_loss + neg_loss))
    return total if pair_count == 0.0 else total / pair_count


if __name__ == "__main__":
    key = jax.random.PRNGKey(0)
    BS, D = 8, 32
    n_classes = 4
    margin, beta_val = 0.2, 1.2
    labels = np.array([0, 0, 1, 1, 2, 2, 3, 3], dtype=np.int32)

    emb = jax.random.normal(key, (BS, D), dtype=jnp.float32)
    emb = emb / jnp.linalg.norm(emb, axis=1, keepdims=True)   # unit-norm embeddings

    # Fresh nn.Parameter init: beta = ones(n_classes) * 1.2 (forward only).
    beta_params = np.full((n_classes,), beta_val, dtype=np.float32)

    rng = np.random.default_rng(0)
    triplets = distance_weighted_sampling(np.asarray(emb), labels, rng)

    loss = margin_loss_forward(emb, labels, triplets, beta_params, margin=margin)
    loss = jax.block_until_ready(loss)

    # Reference evaluated on the same bf16-rounded embeddings the kernel reads;
    # remaining deltas come only from the kernel's f32 accumulation.
    emb_bf16 = np.asarray(jnp.asarray(emb).astype(jnp.bfloat16).astype(jnp.float32))
    ref = _numpy_reference(emb_bf16, triplets, beta_params, labels, margin=margin)
    assert np.isfinite(float(loss))
    np.testing.assert_allclose(float(loss), ref, rtol=5e-4, atol=1e-5)

    print("KERNEL_OK")
</pallas_src>

<mosaic_0001>
module attributes {stable_mosaic.version = 11 : i64} {
  func.func @_margin_loss_kernel(%arg0: i32, %arg1: i32, %arg2: memref<16x128xbf16, #tpu.memory_space<vmem>>, %arg3: memref<16x128xbf16, #tpu.memory_space<vmem>>, %arg4: memref<16x128xbf16, #tpu.memory_space<vmem>>, %arg5: memref<16x128xf32, #tpu.memory_space<vmem>>, %arg6: memref<16x128xf32, #tpu.memory_space<vmem>>, %arg7: memref<16x1xf32, #tpu.memory_space<vmem>>, %arg8: memref<16x1xf32, #tpu.memory_space<vmem>>, %arg9: memref<16x128xf32, #tpu.memory_space<vmem>>, %arg10: memref<16x128xf32, #tpu.memory_space<vmem>>) attributes {dimension_semantics = [#tpu.dimension_semantics<parallel>, #tpu.dimension_semantics<arbitrary>], iteration_bounds = array<i64: 1, 1>, scalar_prefetch = 0 : i64, scratch_operands = 2 : i64, tpu.core_type = #tpu.core_type<tc>, window_params = [{transform_indices = @transform_0, window_bounds = array<i64: 16, 128>}, {transform_indices = @transform_1, window_bounds = array<i64: 16, 128>}, {transform_indices = @transform_2, window_bounds = array<i64: 16, 128>}, {transform_indices = @transform_3, window_bounds = array<i64: 16, 128>}, {transform_indices = @transform_4, window_bounds = array<i64: 16, 128>}, {transform_indices = @transform_5, window_bounds = array<i64: 16, 1>}, {transform_indices = @transform_6, window_bounds = array<i64: 16, 1>}]} {
    %c0_i32 = arith.constant 0 : i32
    %0 = arith.cmpi eq, %arg1, %c0_i32 : i32
    %1 = arith.extui %0 : i1 to i32
    %c0_i32_0 = arith.constant 0 : i32
    %2 = arith.cmpi ne, %1, %c0_i32_0 : i32
    scf.if %2 {
      %cst = arith.constant 0.000000e+00 : f32
      %22 = vector.broadcast %cst : f32 to vector<16x128xf32>
      %c0_16 = arith.constant 0 : index
      %c0_17 = arith.constant 0 : index
      %23 = vector.load %arg9[%c0_16, %c0_17] : memref<16x128xf32, #tpu.memory_space<vmem>>, vector<16x128xf32>
      tpu.vector_store %arg9[%c0_16, %c0_17], %22 {strides = array<i32>} : memref<16x128xf32, #tpu.memory_space<vmem>>, vector<16x128xf32>,
      %cst_18 = arith.constant 0.000000e+00 : f32
      %24 = vector.broadcast %cst_18 : f32 to vector<16x128xf32>
      %c0_19 = arith.constant 0 : index
      %c0_20 = arith.constant 0 : index
      %25 = vector.load %arg10[%c0_19, %c0_20] : memref<16x128xf32, #tpu.memory_space<vmem>>, vector<16x128xf32>
      tpu.vector_store %arg10[%c0_19, %c0_20], %24 {strides = array<i32>} : memref<16x128xf32, #tpu.memory_space<vmem>>, vector<16x128xf32>,
    } else {
    }
    %c0 = arith.constant 0 : index
    %c0_1 = arith.constant 0 : index
    %3 = vector.load %arg9[%c0, %c0_1] : memref<16x128xf32, #tpu.memory_space<vmem>>, vector<16x128xf32>
    %c0_2 = arith.constant 0 : index
    %c0_3 = arith.constant 0 : index
    %4 = vector.load %arg10[%c0_2, %c0_3] : memref<16x128xf32, #tpu.memory_space<vmem>>, vector<16x128xf32>
    %c0_4 = arith.constant 0 : index
    %c0_5 = arith.constant 0 : index
    %5 = vector.load %arg2[%c0_4, %c0_5] : memref<16x128xbf16, #tpu.memory_space<vmem>>, vector<16x128xbf16>
    %6 = arith.extf %5 : vector<16x128xbf16> to vector<16x128xf32>
    %c0_6 = arith.constant 0 : index
    %c0_7 = arith.constant 0 : index
    %7 = vector.load %arg3[%c0_6, %c0_7] : memref<16x128xbf16, #tpu.memory_space<vmem>>, vector<16x128xbf16>
    %8 = arith.extf %7 : vector<16x128xbf16> to vector<16x128xf32>
    %c0_8 = arith.constant 0 : index
    %c0_9 = arith.constant 0 : index
    %9 = vector.load %arg4[%c0_8, %c0_9] : memref<16x128xbf16, #tpu.memory_space<vmem>>, vector<16x128xbf16>
    %10 = arith.extf %9 : vector<16x128xbf16> to vector<16x128xf32>
    %11 = arith.subf %6, %8 : vector<16x128xf32>
    %12 = arith.subf %6, %10 : vector<16x128xf32>
    %13 = arith.mulf %11, %11 : vector<16x128xf32>
    %14 = arith.addf %3, %13 : vector<16x128xf32>
    %15 = arith.mulf %12, %12 : vector<16x128xf32>
    %16 = arith.addf %4, %15 : vector<16x128xf32>
    %c0_10 = arith.constant 0 : index
    %c0_11 = arith.constant 0 : index
    %17 = vector.load %arg9[%c0_10, %c0_11] : memref<16x128xf32, #tpu.memory_space<vmem>>, vector<16x128xf32>
    tpu.vector_store %arg9[%c0_10, %c0_11], %14 {strides = array<i32>} : memref<16x128xf32, #tpu.memory_space<vmem>>, vector<16x128xf32>,
    %c0_12 = arith.constant 0 : index
    %c0_13 = arith.constant 0 : index
    %18 = vector.load %arg10[%c0_12, %c0_13] : memref<16x128xf32, #tpu.memory_space<vmem>>, vector<16x128xf32>
    tpu.vector_store %arg10[%c0_12, %c0_13], %16 {strides = array<i32>} : memref<16x128xf32, #tpu.memory_space<vmem>>, vector<16x128xf32>,
    %c0_i32_14 = arith.constant 0 : i32
    %19 = arith.cmpi eq, %arg1, %c0_i32_14 : i32
    %20 = arith.extui %19 : i1 to i32
    %c0_i32_15 = arith.constant 0 : i32
    %21 = arith.cmpi ne, %20, %c0_i32_15 : i32
    scf.if %21 {
      %c0_16 = arith.constant 0 : index
      %c0_17 = arith.constant 0 : index
      %22 = vector.load %arg5[%c0_16, %c0_17] : memref<16x128xf32, #tpu.memory_space<vmem>>, vector<16x1xf32>
      %c0_18 = arith.constant 0 : index
      %c0_19 = arith.constant 0 : index
      %23 = vector.load %arg6[%c0_18, %c0_19] : memref<16x128xf32, #tpu.memory_space<vmem>>, vector<16x1xf32>
      %c0_20 = arith.constant 0 : index
      %c0_21 = arith.constant 0 : index
      %24 = vector.load %arg9[%c0_20, %c0_21] : memref<16x128xf32, #tpu.memory_space<vmem>>, vector<16x128xf32>
      %cst = arith.constant dense<0.000000e+00> : vector<16xf32>
      %25 = vector.multi_reduction <add>, %24, %cst [1] : vector<16x128xf32> to vector<16xf32>
      %26 = vector.shape_cast %25 : vector<16xf32> to vector<16x1xf32>
      %cst_22 = arith.constant 9.99999993E-9 : f32
      %27 = vector.broadcast %cst_22 : f32 to vector<16x1xf32>
      %28 = arith.addf %26, %27 : vector<16x1xf32>
      %29 = math.sqrt %28 : vector<16x1xf32>
      %c0_23 = arith.constant 0 : index
      %c0_24 = arith.constant 0 : index
      %30 = vector.load %arg10[%c0_23, %c0_24] : memref<16x128xf32, #tpu.memory_space<vmem>>, vector<16x128xf32>
      %cst_25 = arith.constant dense<0.000000e+00> : vector<16xf32>
      %31 = vector.multi_reduction <add>, %30, %cst_25 [1] : vector<16x128xf32> to vector<16xf32>
      %32 = vector.shape_cast %31 : vector<16xf32> to vector<16x1xf32>
      %cst_26 = arith.constant 9.99999993E-9 : f32
      %33 = vector.broadcast %cst_26 : f32 to vector<16x1xf32>
      %34 = arith.addf %32, %33 : vector<16x1xf32>
      %35 = math.sqrt %34 : vector<16x1xf32>
      %36 = arith.subf %29, %22 : vector<16x1xf32>
      %cst_27 = arith.constant 2.000000e-01 : f32
      %37 = vector.broadcast %cst_27 : f32 to vector<16x1xf32>
      %38 = arith.addf %36, %37 : vector<16x1xf32>
      %cst_28 = arith.constant 0.000000e+00 : f32
      %39 = vector.broadcast %cst_28 : f32 to vector<16x1xf32>
      %40 = arith.maximumf %38, %39 : vector<16x1xf32>
      %41 = arith.mulf %23, %40 : vector<16x1xf32>
      %c0_29 = arith.constant 0 : index
      %c0_30 = arith.constant 0 : index
      %42 = vector.load %arg7[%c0_29, %c0_30] : memref<16x1xf32, #tpu.memory_space<vmem>>, vector<16x1xf32>
      tpu.vector_store %arg7[%c0_29, %c0_30], %41 {strides = array<i32>} : memref<16x1xf32, #tpu.memory_space<vmem>>, vector<16x1xf32>,
      %43 = arith.subf %22, %35 : vector<16x1xf32>
      %cst_31 = arith.constant 2.000000e-01 : f32
      %44 = vector.broadcast %cst_31 : f32 to vector<16x1xf32>
      %45 = arith.addf %43, %44 : vector<16x1xf32>
      %cst_32 = arith.constant 0.000000e+00 : f32
      %46 = vector.broadcast %cst_32 : f32 to vector<16x1xf32>
      %47 = arith.maximumf %45, %46 : vector<16x1xf32>
      %48 = arith.mulf %23, %47 : vector<16x1xf32>
      %c0_33 = arith.constant 0 : index
      %c0_34 = arith.constant 0 : index
      %49 = vector.load %arg8[%c0_33, %c0_34] : memref<16x1xf32, #tpu.memory_space<vmem>>, vector<16x1xf32>
      tpu.vector_store %arg8[%c0_33, %c0_34], %48 {strides = array<i32>} : memref<16x1xf32, #tpu.memory_space<vmem>>, vector<16x1xf32>,
    } else {
    }
    return
  }
  func.func @transform_0(%arg0: i32, %arg1: i32) -> (i32, i32) {
    %c0_i32 = arith.constant 0 : i32
    return %arg0, %arg1 : i32, i32
  }
  func.func @transform_1(%arg0: i32, %arg1: i32) -> (i32, i32) {
    %c0_i32 = arith.constant 0 : i32
    return %arg0, %arg1 : i32, i32
  }
  func.func @transform_2(%arg0: i32, %arg1: i32) -> (i32, i32) {
    %c0_i32 = arith.constant 0 : i32
    return %arg0, %arg1 : i32, i32
  }
  func.func @transform_3(%arg0: i32, %arg1: i32) -> (i32, i32) {
    %c0_i32 = arith.constant 0 : i32
    %c0_i32_0 = arith.constant 0 : i32
    return %arg0, %c0_i32 : i32, i32
  }
  func.func @transform_4(%arg0: i32, %arg1: i32) -> (i32, i32) {
    %c0_i32 = arith.constant 0 : i32
    %c0_i32_0 = arith.constant 0 : i32
    return %arg0, %c0_i32 : i32, i32
  }
  func.func @transform_5(%arg0: i32, %arg1: i32) -> (i32, i32) {
    %c0_i32 = arith.constant 0 : i32
    %c0_i32_0 = arith.constant 0 : i32
    return %arg0, %c0_i32 : i32, i32
  }
  func.func @transform_6(%arg0: i32, %arg1: i32) -> (i32, i32) {
    %c0_i32 = arith.constant 0 : i32
    %c0_i32_0 = arith.constant 0 : i32
    return %arg0, %c0_i32 : i32, i32
  }
}

</mosaic_0001>

<llo_original>
// kernel: tpu_custom_call.1
$region0: #{tpu_custom_call.1}
  #allocation0 [shape = 'u32[]', space=smem, size = 0x4, offset = 0x4, fixed_abs, tag = 'smem constant byte address 0x4 - core index']
  #allocation1 [shape = 'u32[144,128]{1,0:T(1,128)}', space=vmem, size = 0x12000, scoped, tag = 'internal scratch']
  #allocation2 [shape = 'f32[16,128]{1,0:T(8,128)}', space=vmem, size = 0x2000, scoped, tag = 'scratch operand']
  #allocation3 [shape = 'f32[16,128]{1,0:T(8,128)}', space=vmem, size = 0x2000, scoped, tag = 'scratch operand']
  %s0 = inlined_call_operand.hbm [shape: bf16[16,128], index: 0, kind: input, shape index: {}]
  %s1 = inlined_call_operand.hbm [shape: bf16[16,128], index: 1, kind: input, shape index: {}]
  %s2 = inlined_call_operand.hbm [shape: bf16[16,128], index: 2, kind: input, shape index: {}]
  %s3 = inlined_call_operand.hbm [shape: f32[16,128], index: 3, kind: input, shape index: {}]
  %s4 = inlined_call_operand.hbm [shape: f32[16,128], index: 4, kind: input, shape index: {}]
  %s5 = inlined_call_operand.vmem [shape: f32[16,1], index: 5, kind: output, shape index: {0}]
  %s6 = inlined_call_operand.vmem [shape: f32[16,1], index: 6, kind: output, shape index: {1}]
  %7 = xla_tuple %s5, %s6
  %s8 = sld [smem:[#allocation0]]
  $region66: #{tpu_custom_call.1} parent=0
    _
  %s10 = ssub.s32 1, %s8
  %s11 = scalar_select 0, %s10, %s8
  $region1: #{tpu_custom_call.1} parent=0
    #allocation4 [shape = 'u8[4096]{0}', space=vmem, size = 0x1000, scoped, tag = 'input window, operand 0, single buffered']
    #allocation5 [shape = 's32[1]{0}', space=sflag, size = 0x4, scoped, tag = 'scoped memory for tpu_custom_call.1']
    #allocation6 [shape = 'u8[4096]{0}', space=vmem, size = 0x1000, scoped, tag = 'input window, operand 1, single buffered']
    #allocation7 [shape = 's32[1]{0}', space=sflag, size = 0x4, scoped, tag = 'scoped memory for tpu_custom_call.1']
    #allocation8 [shape = 'u8[4096]{0}', space=vmem, size = 0x1000, scoped, tag = 'input window, operand 2, single buffered']
    #allocation9 [shape = 'u8[8192]{0}', space=vmem, size = 0x2000, scoped, tag = 'input window, operand 3, single buffered']
    #allocation10 [shape = 's32[1]{0}', space=sflag, size = 0x4, scoped, tag = 'scoped memory for tpu_custom_call.1']
    #allocation11 [shape = 'u8[8192]{0}', space=vmem, size = 0x2000, scoped, tag = 'input window, operand 4, single buffered']
    %12 = vsyncpa [#allocation5], 0
    %13 = vsyncpa [#allocation7], 0
    %14 = vsyncpa [#allocation10], 0
    // Predicated region
    $region2: #{tpu_custom_call.1} parent=1 // pred_check
      _
    $region3: #{tpu_custom_call.1} parent=1 // pred_check_branch
      %16 = sbr.rel (0) target = $region5
    $region4: #{tpu_custom_call.1} parent=1 // pred_region
      %s18 = ssub.s32 128, 128
      %19 = vsyncadd [#allocation5], %s18
      %s20 = sshll.u32 [#allocation4], 4
      %s21 = int_to_ptr.vmem [resolvable:$true] %s20
      %26 = dma.hbm_to_vmem [thread:$0]  %s0, 128, %s21, [#allocation5], 64, 64, 4
    $region5: #{tpu_custom_call.1} parent=1 // pred_fallthru
      _
    // Predicated region
    $region6: #{tpu_custom_call.1} parent=1 // pred_check
      _
    $region7: #{tpu_custom_call.1} parent=1 // pred_check_branch
      %28 = sbr.rel (0) target = $region9
    $region8: #{tpu_custom_call.1} parent=1 // pred_region
      %s30 = ssub.s32 128, 128
      %31 = vsyncadd [#allocation7], %s30
      %s32 = sshll.u32 [#allocation6], 4
      %s33 = int_to_ptr.vmem [resolvable:$true] %s32
      %38 = dma.hbm_to_vmem [thread:$0]  %s1, 128, %s33, [#allocation7], 64, 64, 4
    $region9: #{tpu_custom_call.1} parent=1 // pred_fallthru
      _
    // Predicated region
    $region10: #{tpu_custom_call.1} parent=1 // pred_check
      _
    $region11: #{tpu_custom_call.1} parent=1 // pred_check_branch
      %40 = sbr.rel (0) target = $region13
    $region12: #{tpu_custom_call.1} parent=1 // pred_region
      %s42 = ssub.s32 128, 128
      %43 = vsyncadd [#allocation7], %s42
      %s44 = sshll.u32 [#allocation8], 4
      %s45 = int_to_ptr.vmem [resolvable:$true] %s44
      %50 = dma.hbm_to_vmem [thread:$0]  %s2, 128, %s45, [#allocation7], 64, 64, 4
    $region13: #{tpu_custom_call.1} parent=1 // pred_fallthru
      _
    // Predicated region
    $region14: #{tpu_custom_call.1} parent=1 // pred_check
      _
    $region15: #{tpu_custom_call.1} parent=1 // pred_check_branch
      %52 = sbr.rel (0) target = $region17
    $region16: #{tpu_custom_call.1} parent=1 // pred_region
      %s54 = ssub.s32 256, 256
      %55 = vsyncadd [#allocation10], %s54
      %s56 = sshll.u32 [#allocation9], 4
      %s57 = int_to_ptr.vmem [resolvable:$true] %s56
      %62 = dma.hbm_to_vmem [thread:$0]  %s3, 256, %s57, [#allocation10], 128, 128, 8
    $region17: #{tpu_custom_call.1} parent=1 // pred_fallthru
      _
    // Predicated region
    $region18: #{tpu_custom_call.1} parent=1 // pred_check
      _
    $region19: #{tpu_custom_call.1} parent=1 // pred_check_branch
      %64 = sbr.rel (0) target = $region21
    $region20: #{tpu_custom_call.1} parent=1 // pred_region
      %s66 = ssub.s32 256, 256
      %67 = vsyncadd [#allocation10], %s66
      %s68 = sshll.u32 [#allocation11], 4
      %s69 = int_to_ptr.vmem [resolvable:$true] %s68
      %74 = dma.hbm_to_vmem [thread:$0]  %s4, 256, %s69, [#allocation10], 128, 128, 8
    $region21: #{tpu_custom_call.1} parent=1 // pred_fallthru
      _
    // Predicated region
    $region22: #{tpu_custom_call.1} parent=1 // pred_check
      _
    $region23: #{tpu_custom_call.1} parent=1 // pred_check_branch
      %76 = sbr.rel (0) target = $region25
    $region24: #{tpu_custom_call.1} parent=1 // pred_region
      %77 = dma.done [#allocation5], 128
    $region25: #{tpu_custom_call.1} parent=1 // pred_fallthru
      _
    // Predicated region
    $region26: #{tpu_custom_call.1} parent=1 // pred_check
      _
    $region27: #{tpu_custom_call.1} parent=1 // pred_check_branch
      %79 = sbr.rel (0) target = $region29
    $region28: #{tpu_custom_call.1} parent=1 // pred_region
      %80 = dma.done [#allocation7], 128
    $region29: #{tpu_custom_call.1} parent=1 // pred_fallthru
      _
    // Predicated region
    $region30: #{tpu_custom_call.1} parent=1 // pred_check
      _
    $region31: #{tpu_custom_call.1} parent=1 // pred_check_branch
      %82 = sbr.rel (0) target = $region33
    $region32: #{tpu_custom_call.1} parent=1 // pred_region
      %83 = dma.done [#allocation7], 128
    $region33: #{tpu_custom_call.1} parent=1 // pred_fallthru
      _
    // Predicated region
    $region34: #{tpu_custom_call.1} parent=1 // pred_check
      _
    $region35: #{tpu_custom_call.1} parent=1 // pred_check_branch
      %85 = sbr.rel (0) target = $region37
    $region36: #{tpu_custom_call.1} parent=1 // pred_region
      %86 = dma.done [#allocation10], 256
    $region37: #{tpu_custom_call.1} parent=1 // pred_fallthru
      _
    // Predicated region
    $region38: #{tpu_custom_call.1} parent=1 // pred_check
      _
    $region39: #{tpu_custom_call.1} parent=1 // pred_check_branch
      %88 = sbr.rel (0) target = $region41
    $region40: #{tpu_custom_call.1} parent=1 // pred_region
      %89 = dma.done [#allocation10], 256
    $region41: #{tpu_custom_call.1} parent=1 // pred_fallthru
      _
    %p90 = scmp.eq.s32.totalorder 0, 0
    // Predicated region
    $region42: #{tpu_custom_call.1} parent=1 // pred_check
      %p91 = pneg %p90
    $region43: #{tpu_custom_call.1} parent=1 // pred_check_branch
      %93 = sbr.rel (%p91) target = $region45
    $region44: #{tpu_custom_call.1} parent=1 // pred_region
      %94 = vst [vmem:[#allocation2] sm:$0xff] 0.0
      %95 = vst [vmem:[#allocation2 + $0x8] sm:$0xff] 0.0
      %96 = vst [vmem:[#allocation3] sm:$0xff] 0.0
      %97 = vst [vmem:[#allocation3 + $0x8] sm:$0xff] 0.0
    $region45: #{tpu_custom_call.1} parent=1 // pred_fallthru
      _
    %v98 = vld [vmem:[#allocation2] sm:$0xff]
    %v99 = vld [vmem:[#allocation2 + $0x8] sm:$0xff]
    %v100 = vld [vmem:[#allocation3] sm:$0xff]
    %v101 = vld [vmem:[#allocation3 + $0x8] sm:$0xff]
    %v102 = vld [vmem:[#allocation4] sm:$0xf]
    %v103 = vld [vmem:[#allocation4 + $0x4] sm:$0xf]
    %v104 = vunpack.c.l.bf16 %v102
    %v105 = vunpack.c.l.bf16 %v103
    %v106 = vld [vmem:[#allocation6] sm:$0xf]
    %v107 = vld [vmem:[#allocation6 + $0x4] sm:$0xf]
    %v108 = vunpack.c.l.bf16 %v106
    %v109 = vunpack.c.l.bf16 %v107
    %v110 = vld [vmem:[#allocation8] sm:$0xf]
    %v111 = vld [vmem:[#allocation8 + $0x4] sm:$0xf]
    %v112 = vunpack.c.l.bf16 %v110
    %v113 = vunpack.c.l.bf16 %v111
    %v114 = vsub.f32 %v104, %v108
    %v115 = vsub.f32 %v105, %v109
    %v116 = vsub.f32 %v104, %v112
    %v117 = vsub.f32 %v105, %v113
    %v118 = vmul.f32 %v114, %v114
    %v119 = vmul.f32 %v115, %v115
    %v120 = vadd.f32 %v98, %v118
    %v121 = vadd.f32 %v99, %v119
    %v122 = vmul.f32 %v116, %v116
    %v123 = vmul.f32 %v117, %v117
    %v124 = vadd.f32 %v100, %v122
    %v125 = vadd.f32 %v101, %v123
    %126 = vst [vmem:[#allocation2] sm:$0xff] %v120
    %127 = vst [vmem:[#allocation2 + $0x8] sm:$0xff] %v121
    %128 = vst [vmem:[#allocation3] sm:$0xff] %v124
    %129 = vst [vmem:[#allocation3 + $0x8] sm:$0xff] %v125
    // Predicated region
    $region46: #{tpu_custom_call.1} parent=1 // pred_check
      %p130 = pneg %p90
    $region47: #{tpu_custom_call.1} parent=1 // pred_check_branch
      %132 = sbr.rel (%p130) target = $region49
    $region48: #{tpu_custom_call.1} parent=1 // pred_region
      %v133 = vld [vmem:[#allocation9] sm:$0xff]
      %v134 = vld [vmem:[#allocation9 + $0x8] sm:$0xff]
      %v135 = vld [vmem:[#allocation11] sm:$0xff]
      %v136 = vld [vmem:[#allocation11 + $0x8] sm:$0xff]
      %v137 = vld [vmem:[#allocation2] sm:$0xff]
      %v138 = vld [vmem:[#allocation2 + $0x8] sm:$0xff]
      %139 = vadd.xlane.f32.xlu0 %v137
      %v140 = vpop.xlane.xlu0 %139
      %141 = vadd.xlane.f32.xlu0 %v138
      %v142 = vpop.xlane.xlu0 %141
      %v143 = vadd.f32 %v140, 1e-08
      %v144 = vadd.f32 %v142, 1e-08
      %v145 = vrsqrt.pop %v143
      %v146 = vmul.f32 %v143, %v145
      %vm147 = vcmp.eq.f32.partialorder %v143, inf
      %v148 = vsel %vm147, %v143, %v146
      %vm149 = vcmp.eq.f32.partialorder %v143, 0.0
      %v150 = vand.u32 %v143, 2147483648
      %v151 = vsel %vm149, %v150, %v148
      %v152 = vrsqrt.pop %v144
      %v153 = vmul.f32 %v144, %v152
      %vm154 = vcmp.eq.f32.partialorder %v144, inf
      %v155 = vsel %vm154, %v144, %v153
      %vm156 = vcmp.eq.f32.partialorder %v144, 0.0
      %v157 = vand.u32 %v144, 2147483648
      %v158 = vsel %vm156, %v157, %v155
      %v159 = vld [vmem:[#allocation3] sm:$0xff]
      %v160 = vld [vmem:[#allocation3 + $0x8] sm:$0xff]
      %161 = vadd.xlane.f32.xlu0 %v159
      %v162 = vpop.xlane.xlu0 %161
      %163 = vadd.xlane.f32.xlu0 %v160
      %v164 = vpop.xlane.xlu0 %163
      %v165 = vadd.f32 %v162, 1e-08
      %v166 = vadd.f32 %v164, 1e-08
      %v167 = vrsqrt.pop %v165
      %v168 = vmul.f32 %v165, %v167
      %vm169 = vcmp.eq.f32.partialorder %v165, inf
      %v170 = vsel %vm169, %v165, %v168
      %vm171 = vcmp.eq.f32.partialorder %v165, 0.0
      %v172 = vand.u32 %v165, 2147483648
      %v173 = vsel %vm171, %v172, %v170
      %v174 = vrsqrt.pop %v166
      %v175 = vmul.f32 %v166, %v174
      %vm176 = vcmp.eq.f32.partialorder %v166, inf
      %v177 = vsel %vm176, %v166, %v175
      %vm178 = vcmp.eq.f32.partialorder %v166, 0.0
      %v179 = vand.u32 %v166, 2147483648
      %v180 = vsel %vm178, %v179, %v177
      %v181 = vsub.f32 %v151, %v133
      %v182 = vsub.f32 %v158, %v134
      %v183 = vadd.f32 %v181, 0.2
      %v184 = vadd.f32 %v182, 0.2
      %v185 = vmax.f32 %v183, 0.0
      %v186 = vmax.f32 %v184, 0.0
      %v187 = vmul.f32 %v135, %v185
      %v188 = vmul.f32 %v136, %v186
      %vm189 = vcmask 7168
      %190 = vst.msk [vmem:[%s5] sm:$0xff] %vm189, %v187
      %191 = vst.msk [vmem:[%s5 + $0x8] sm:$0xff] %vm189, %v188
      %v192 = vsub.f32 %v133, %v173
      %v193 = vsub.f32 %v134, %v180
      %v194 = vadd.f32 %v192, 0.2
      %v195 = vadd.f32 %v193, 0.2
      %v196 = vmax.f32 %v194, 0.0
      %v197 = vmax.f32 %v195, 0.0
      %v198 = vmul.f32 %v135, %v196
      %v199 = vmul.f32 %v136, %v197
      %200 = vst.msk [vmem:[%s6] sm:$0xff] %vm189, %v198
      %201 = vst.msk [vmem:[%s6 + $0x8] sm:$0xff] %vm189, %v199
    $region49: #{tpu_custom_call.1} parent=1 // pred_fallthru
      _
    // Predicated region
    $region50: #{tpu_custom_call.1} parent=1 // pred_check
      _
    $region51: #{tpu_custom_call.1} parent=1 // pred_check_branch
      %203 = sbr.rel (0) target = $region53
    $region52: #{tpu_custom_call.1} parent=1 // pred_region
      _
    $region53: #{tpu_custom_call.1} parent=1 // pred_fallthru
      _
    // Predicated region
    $region54: #{tpu_custom_call.1} parent=1 // pred_check
      _
    $region55: #{tpu_custom_call.1} parent=1 // pred_check_branch
      %205 = sbr.rel (0) target = $region57
    $region56: #{tpu_custom_call.1} parent=1 // pred_region
      _
    $region57: #{tpu_custom_call.1} parent=1 // pred_fallthru
      _
    // Predicated region
    $region58: #{tpu_custom_call.1} parent=1 // pred_check
      _
    $region59: #{tpu_custom_call.1} parent=1 // pred_check_branch
      %207 = sbr.rel (0) target = $region61
    $region60: #{tpu_custom_call.1} parent=1 // pred_region
      _
    $region61: #{tpu_custom_call.1} parent=1 // pred_fallthru
      _
    // Predicated region
    $region62: #{tpu_custom_call.1} parent=1 // pred_check
      _
    $region63: #{tpu_custom_call.1} parent=1 // pred_check_branch
      %209 = sbr.rel (0) target = $region65
    $region64: #{tpu_custom_call.1} parent=1 // pred_region
      _
    $region65: #{tpu_custom_call.1} parent=1 // pred_fallthru
      _
    %210 = vsyncpa [#allocation5], 1
    %211 = vsyncpa [#allocation7], 1
    %212 = vsyncpa [#allocation10], 1

</llo_original>
